<compile_context>
chip_gen: v7x
topology: tpu7x:2x2x1
jax: 0.10.0
libtpu: 0.0.40
codegen_flags: <defaults>
</compile_context>

<pallas_src>
import jax
import jax.numpy as jnp
from jax.experimental import pallas as pl
from jax.experimental.pallas import tpu as pltpu

_LANE = 512          # lane-dense slab width (multiple of 128 -> unmasked bool stores)
_BLOCK_ROWS = 1024   # 1024 x 512 f32 = 2 MiB in + 0.5 MiB bool out per block;
                     # x2 double buffers ~5 MiB -> safe on v5e/v6e/v7x scoped VMEM.


def _isinf_kernel(x_ref, o_ref):
    o_ref[...] = jnp.isinf(x_ref[...])


def pallas_isinf(x):
    """Elementwise torch.isinf equivalent: bool array, same shape/layout as x."""
    orig_shape = x.shape
    n = x.size

    # torch.isinf on integer / bool inputs is all-False; no kernel needed.
    if not jnp.issubdtype(x.dtype, jnp.floating):
        return jnp.zeros(orig_shape, dtype=jnp.bool_)
    if n == 0:
        return jnp.zeros(orig_shape, dtype=jnp.bool_)

    # Flatten to a lane-dense 2D slab. Only pad the ragged tail (if any) to a
    # multiple of the lane width; zero-padding is isinf-safe (isinf(0) = False).
    x_flat = jnp.ravel(x)
    pad = (-n) % _LANE
    if pad:
        x_flat = jnp.pad(x_flat, (0, pad))
    rows = (n + pad) // _LANE
    x2d = x_flat.reshape(rows, _LANE)

    # Block either covers the whole (small) slab, or is a multiple-of-8 row tile;
    # a non-divisible row count just becomes a masked partial last block.
    block_rows = min(_BLOCK_ROWS, rows)
    num_blocks = pl.cdiv(rows, block_rows)

    out2d = pl.pallas_call(
        _isinf_kernel,
        out_shape=jax.ShapeDtypeStruct((rows, _LANE), jnp.bool_),
        grid=(num_blocks,),
        in_specs=[pl.BlockSpec((block_rows, _LANE), lambda i: (i, 0))],
        out_specs=pl.BlockSpec((block_rows, _LANE), lambda i: (i, 0)),
        compiler_params=pltpu.CompilerParams(
            # "parallel": lets v7x shard row tiles across its 2 TensorCores;
            # measured neutral on single-TC v5e/v6e.
            dimension_semantics=("parallel",),
        ),
        cost_estimate=pl.CostEstimate(
            flops=n,
            transcendentals=0,
            bytes_accessed=int(x.dtype.itemsize) * n + n,  # f32 in + packed-bool out
        ),
    )(x2d)

    if pad:
        return out2d.reshape(-1)[:n].reshape(orig_shape)
    return out2d.reshape(orig_shape)


if __name__ == "__main__":
    key = jax.random.PRNGKey(0)
    x = jax.random.normal(key, (2, 4, 16, 16), dtype=jnp.float32)
    # Inject inf / -inf / nan so the op is exercised meaningfully.
    x = x.at[0, 0, 0, 0].set(jnp.inf)
    x = x.at[1, 2, 3, 4].set(-jnp.inf)
    x = x.at[1, 3, 15, 15].set(jnp.nan)  # nan must NOT be flagged

    out = pallas_isinf(x)
    jax.block_until_ready(out)

    ref = jnp.isinf(x)
    assert out.shape == x.shape and out.dtype == jnp.bool_
    assert bool(jnp.all(out == ref))

    # Also exercise a larger, multi-block, ragged case to hit the tiled path.
    y = jax.random.normal(jax.random.PRNGKey(1), (3, 5, 37, 41), dtype=jnp.float32)
    y = y.at[2, 4, 36, 40].set(jnp.inf)
    out_y = pallas_isinf(y)
    jax.block_until_ready(out_y)
    assert bool(jnp.all(out_y == jnp.isinf(y)))

    print("KERNEL_OK")
</pallas_src>

<mosaic_0001>
module attributes {stable_mosaic.version = 11 : i64} {
  func.func @_isinf_kernel(%arg0: i32, %arg1: memref<4x512xf32, #tpu.memory_space<vmem>>, %arg2: memref<4x512xi32, #tpu.memory_space<vmem>>) attributes {dimension_semantics = [#tpu.dimension_semantics<parallel>], iteration_bounds = array<i64: 1>, scalar_prefetch = 0 : i64, scratch_operands = 0 : i64, tpu.core_type = #tpu.core_type<tc>, window_params = [{transform_indices = @transform_0, window_bounds = array<i64: 4, 512>}, {transform_indices = @transform_1, window_bounds = array<i64: 4, 512>}]} {
    %c0 = arith.constant 0 : index
    %c0_0 = arith.constant 0 : index
    %0 = vector.load %arg1[%c0, %c0_0] : memref<4x512xf32, #tpu.memory_space<vmem>>, vector<4x512xf32>
    %1 = math.absf %0 : vector<4x512xf32>
    %cst = arith.constant 0x7F800000 : f32
    %2 = vector.broadcast %cst : f32 to vector<4x512xf32>
    %3 = arith.cmpf oeq, %1, %2 : vector<4x512xf32>
    %c0_1 = arith.constant 0 : index
    %c0_2 = arith.constant 0 : index
    %4 = vector.load %arg2[%c0_1, %c0_2] : memref<4x512xi32, #tpu.memory_space<vmem>>, vector<4x512xi32>
    %5 = arith.extui %3 : vector<4x512xi1> to vector<4x512xi32>
    %cst_3 = arith.constant dense<0> : vector<4x512xi32>
    %6 = arith.cmpi ne, %4, %cst_3 : vector<4x512xi32>
    tpu.vector_store %arg2[%c0_1, %c0_2], %5 {strides = array<i32>} : memref<4x512xi32, #tpu.memory_space<vmem>>, vector<4x512xi32>,
    return
  }
  func.func @transform_0(%arg0: i32) -> (i32, i32) {
    %c0_i32 = arith.constant 0 : i32
    %c0_i32_0 = arith.constant 0 : i32
    return %arg0, %c0_i32 : i32, i32
  }
  func.func @transform_1(%arg0: i32) -> (i32, i32) {
    %c0_i32 = arith.constant 0 : i32
    %c0_i32_0 = arith.constant 0 : i32
    return %arg0, %c0_i32 : i32, i32
  }
}

</mosaic_0001>

<llo_original>
// kernel: tpu_custom_call.1
$region0: #{tpu_custom_call.1}
  #allocation0 [shape = 'u32[]', space=smem, size = 0x4, offset = 0x4, fixed_abs, tag = 'smem constant byte address 0x4 - core index']
  #allocation1 [shape = 'u32[144,128]{1,0:T(1,128)}', space=vmem, size = 0x12000, scoped, tag = 'internal scratch']
  %s0 = inlined_call_operand.hbm [shape: f32[4,512], index: 0, kind: input, shape index: {}]
  %s1 = inlined_call_operand.vmem [shape: s32[4,512], index: 1, kind: output, shape index: {}]
  %s2 = sld [smem:[#allocation0]]
  $region18: #{tpu_custom_call.1} parent=0
    _
  %s4 = ssub.s32 1, %s2
  %s5 = scalar_select 0, %s4, %s2
  $region1: #{tpu_custom_call.1} parent=0
    #allocation2 [shape = 'u8[8192]{0}', space=vmem, size = 0x2000, scoped, tag = 'input window, operand 0, single buffered']
    #allocation3 [shape = 's32[1]{0}', space=sflag, size = 0x4, scoped, tag = 'scoped memory for tpu_custom_call.1']
    %6 = vsyncpa [#allocation3], 0
    // Predicated region
    $region2: #{tpu_custom_call.1} parent=1 // pred_check
      _
    $region3: #{tpu_custom_call.1} parent=1 // pred_check_branch
      %8 = sbr.rel (0) target = $region5
    $region4: #{tpu_custom_call.1} parent=1 // pred_region
      %s10 = ssub.s32 256, 256
      %11 = vsyncadd [#allocation3], %s10
      %s13 = sshll.u32 [#allocation2], 4
      %s14 = int_to_ptr.vmem [resolvable:$true] %s13
      %16 = dma.hbm_to_vmem [thread:$0]  %s0, 256, %s14, [#allocation3]
    $region5: #{tpu_custom_call.1} parent=1 // pred_fallthru
      _
    // Predicated region
    $region6: #{tpu_custom_call.1} parent=1 // pred_check
      _
    $region7: #{tpu_custom_call.1} parent=1 // pred_check_branch
      %18 = sbr.rel (0) target = $region9
    $region8: #{tpu_custom_call.1} parent=1 // pred_region
      %19 = dma.done [#allocation3], 256
    $region9: #{tpu_custom_call.1} parent=1 // pred_fallthru
      _
    %v20 = vld [vmem:[#allocation2] sm:$0xff]
    %v21 = vld [vmem:[#allocation2 + $0x8] sm:$0xff]
    %v22 = vand.u32 2147483647, %v20
    %v23 = vand.u32 2147483647, %v21
    %vm24 = vcmp.eq.f32.partialorder %v22, inf
    %vm25 = vcmp.eq.f32.partialorder %v23, inf
    %v26 = vsel %vm24, 1, 0
    %v27 = vsel %vm25, 1, 0
    %28 = vst [vmem:[%s1] sm:$0xff] %v26
    %29 = vst [vmem:[%s1 + $0x8] sm:$0xff] %v27
    // Predicated region
    $region10: #{tpu_custom_call.1} parent=1 // pred_check
      _
    $region11: #{tpu_custom_call.1} parent=1 // pred_check_branch
      %31 = sbr.rel (0) target = $region13
    $region12: #{tpu_custom_call.1} parent=1 // pred_region
      _
    $region13: #{tpu_custom_call.1} parent=1 // pred_fallthru
      _
    // Predicated region
    $region14: #{tpu_custom_call.1} parent=1 // pred_check
      _
    $region15: #{tpu_custom_call.1} parent=1 // pred_check_branch
      %33 = sbr.rel (0) target = $region17
    $region16: #{tpu_custom_call.1} parent=1 // pred_region
      _
    $region17: #{tpu_custom_call.1} parent=1 // pred_fallthru
      _
    %34 = vsyncpa [#allocation3], 1

</llo_original>
